<compile_context>
chip_gen: v7x
topology: tpu7x:2x2x1
jax: 0.10.0
libtpu: 0.0.40
codegen_flags: <defaults>
</compile_context>

<pallas_src>
import functools
import math

import jax
import jax.numpy as jnp
from jax.experimental import pallas as pl
from jax.experimental.pallas import tpu as pltpu


def _round_up(x, m):
    return ((x + m - 1) // m) * m


def _cdiv(a, b):
    return -(-a // b)


def meanpool_kernel(src_ref, seq_ref, w1_ref, b1_ref, w2_ref, b2_ref,
                    out_ref, acc_ref, *, inv_n, feat_dim, acc_w, tile_l, rem_l):
    """Grid = (batch_tiles, seq_chunks).  seq arrives flattened as lane-dense
    (tile_b, tile_l) blocks; columns are summed modulo acc_w (a multiple of
    feat_dim) into acc_ref, and the acc_w//feat_dim lane phases are folded once
    in the finalize step before the fused MergeLayer MLP."""
    l = pl.program_id(1)
    n_l = pl.num_programs(1)

    @pl.when(l == 0)
    def _init():
        acc_ref[...] = jnp.zeros_like(acc_ref)

    def accum(n_valid):  # n_valid is a static Python int
        acc = acc_ref[...]
        n_full = n_valid // acc_w
        n_part = n_valid % acc_w
        # Static, 128-aligned lane slices: pure vreg selection, no relayout.
        for c in range(n_full):
            acc = acc + seq_ref[:, c * acc_w:(c + 1) * acc_w].astype(jnp.float32)
        if n_part:
            # Remainder chunk of the (uneven) last block: zero the columns past
            # the true end of the flattened row instead of padding seq in HBM.
            tail = seq_ref[:, n_full * acc_w:(n_full + 1) * acc_w].astype(jnp.float32)
            col = jax.lax.broadcasted_iota(jnp.int32, (1, acc_w), 1)
            acc = acc + jnp.where(col < n_part, tail, 0.0)
        acc_ref[...] = acc

    if rem_l == 0:
        accum(tile_l)
    else:
        @pl.when(l < n_l - 1)
        def _full_block():
            accum(tile_l)

        @pl.when(l == n_l - 1)
        def _last_block():
            accum(rem_l)

    @pl.when(l == n_l - 1)
    def _finalize():
        acc = acc_ref[...]                                     # (tile_b, acc_w) f32
        hn = acc[:, 0:feat_dim]
        for p in range(1, acc_w // feat_dim):                  # fold lane phases
            hn = hn + acc[:, p * feat_dim:(p + 1) * feat_dim]
        hn = hn * inv_n                                        # exact mean over N
        src = src_ref[...].astype(jnp.float32)
        # MergeLayer.fc1: cat([hn, src]) @ W1 == hn @ W1[:D] + src @ W1[D:]
        h = (jnp.dot(hn, w1_ref[:feat_dim, :], preferred_element_type=jnp.float32)
             + jnp.dot(src, w1_ref[feat_dim:, :], preferred_element_type=jnp.float32)
             + b1_ref[...])
        h = jnp.maximum(h, 0.0)                                # ReLU
        out = jnp.dot(h, w2_ref[...], preferred_element_type=jnp.float32) + b2_ref[...]
        out_ref[...] = out.astype(out_ref.dtype)


def mean_pool_forward(src, src_t, seq, seq_t, mask, params, *,
                      tile_b=None, tile_l=None):
    """Returns (output, None), matching MeanPool.forward."""
    del src_t, seq_t, mask  # unused by MeanPool.forward (matches PyTorch)
    w1, b1, w2, b2 = params  # w1:[2D,D] b1:[1,D] w2:[D,D] b2:[1,D]  ([in,out])
    B, N, D = seq.shape
    itemsize = jnp.dtype(seq.dtype).itemsize
    L = N * D                                    # flattened per-row length
    P = (D * 128) // math.gcd(D, 128)            # lane period = lcm(D, 128)

    # ---- batch tile (>= 2 tiles once B >= 16 so v7x's 2 TCs both get work) --
    if B < 8:
        tile_b = B                               # full-dim block (always legal)
    else:
        if tile_b is None:
            tile_b = _round_up(_cdiv(B, 2), 8) if B >= 16 else 8
        tile_b = min(int(tile_b), B, 256)
        tile_b = max(8, (tile_b // 8) * 8)       # multiple of 8, never > B
    pb = _round_up(tile_b, 8)                    # sublane-padded rows actually in VMEM

    # ---- generation-aware VMEM budget --------------------------------------
    try:
        info = pltpu.get_tpu_info()
        vmem_cap = int(getattr(info, "vmem_capacity_bytes", 64 * 1024 * 1024))
    except Exception:
        vmem_cap = 64 * 1024 * 1024
    # ~3/4 of physical VMEM: ~48 MiB on v7x (64 MiB), ~96 MiB on v5e/v6e (128 MiB).
    vmem_limit = max(16 << 20, min((vmem_cap * 3) // 4, 100 << 20))
    # Double-buffered seq stream gets (limit - headroom); >=4 MiB per buffer is
    # plenty to amortize the ~0.35 us per-grid-step overhead.
    per_buf = min((vmem_limit - (4 << 20)) // 2, 16 << 20)

    # ---- seq (lane) tile: multiple of P, budgeted with the true VMEM footprint
    if L <= P:
        tile_l = L                               # one chunk == whole flattened row
        acc_w = L
    else:
        if tile_l is None:
            vregs_per_chunk = (pb // 8) * (P // 128)
            chunk_cap = max(4, min(512, 2048 // max(vregs_per_chunk, 1)))
            max_cols = max(P, (per_buf // (pb * itemsize)) // P * P)
            tile_l = min(max_cols, chunk_cap * P, (L // P) * P)
        else:
            tile_l = max(P, min((int(tile_l) // P) * P, (L // P) * P))
        acc_w = P

    seq_flat = seq.reshape(B, L)                 # free: contiguous trailing dims
    grid = (_cdiv(B, tile_b), _cdiv(L, tile_l))
    rem_l = L % tile_l

    kernel = functools.partial(
        meanpool_kernel, inv_n=1.0 / N, feat_dim=D,
        acc_w=acc_w, tile_l=tile_l, rem_l=rem_l)

    out_dtype = src.dtype
    w_bytes = sum(int(a.size) * jnp.dtype(a.dtype).itemsize for a in (w1, b1, w2, b2))
    cost = pl.CostEstimate(
        flops=int(B * N * D + 2 * B * (2 * D) * D + 2 * B * D * D),
        transcendentals=0,
        bytes_accessed=int(B * L * itemsize
                           + B * D * jnp.dtype(src.dtype).itemsize
                           + B * D * jnp.dtype(out_dtype).itemsize
                           + w_bytes),
    )

    out = pl.pallas_call(
        kernel,
        out_shape=jax.ShapeDtypeStruct((B, D), out_dtype),
        grid=grid,
        in_specs=[
            pl.BlockSpec((tile_b, D), lambda i, l: (i, 0)),        # src
            pl.BlockSpec((tile_b, tile_l), lambda i, l: (i, l)),   # seq (flattened)
            pl.BlockSpec((2 * D, D), lambda i, l: (0, 0)),         # W1
            pl.BlockSpec((1, D), lambda i, l: (0, 0)),             # b1
            pl.BlockSpec((D, D), lambda i, l: (0, 0)),             # W2
            pl.BlockSpec((1, D), lambda i, l: (0, 0)),             # b2
        ],
        out_specs=pl.BlockSpec((tile_b, D), lambda i, l: (i, 0)),
        scratch_shapes=[pltpu.VMEM((tile_b, acc_w), jnp.float32)],
        compiler_params=pltpu.CompilerParams(
            dimension_semantics=("parallel", "arbitrary"),
            vmem_limit_bytes=int(vmem_limit),
        ),
        cost_estimate=cost,
    )(src, seq_flat, w1, b1, w2, b2)

    return out, None


def init_params(feat_dim, key):
    """Deterministic init of MergeLayer(feat_dim, feat_dim, feat_dim, feat_dim).
    fc1: Linear(2*feat_dim, feat_dim), fc2: Linear(feat_dim, feat_dim).
    Stored as [in, out] so the kernel computes x @ W + b."""
    k1, k2, k3, k4 = jax.random.split(key, 4)
    s1 = 1.0 / jnp.sqrt(2.0 * feat_dim)
    s2 = 1.0 / jnp.sqrt(1.0 * feat_dim)
    w1 = jax.random.uniform(k1, (2 * feat_dim, feat_dim), jnp.float32, -s1, s1)
    b1 = jax.random.uniform(k2, (1, feat_dim), jnp.float32, -s1, s1)
    w2 = jax.random.uniform(k3, (feat_dim, feat_dim), jnp.float32, -s2, s2)
    b2 = jax.random.uniform(k4, (1, feat_dim), jnp.float32, -s2, s2)
    return (w1, b1, w2, b2)


def reference_forward(src, seq, params):
    w1, b1, w2, b2 = params
    hn = jnp.mean(seq, axis=1)
    x = jnp.concatenate([hn, src], axis=1)
    h = jnp.maximum(x @ w1 + b1, 0.0)
    return h @ w2 + b2


def _run_case(B, N, D, key, params, **kw):
    k_src, k_seq, k_srct, k_seqt = jax.random.split(key, 4)
    src = jax.random.normal(k_src, (B, D), jnp.float32)
    seq = jax.random.normal(k_seq, (B, N, D), jnp.float32)
    src_t = jax.random.normal(k_srct, (B, D), jnp.float32)      # unused by forward
    seq_t = jax.random.normal(k_seqt, (B, N, D), jnp.float32)   # unused by forward
    mask = jnp.zeros((B, N), jnp.float32)                       # unused by forward

    out, attn = mean_pool_forward(src, src_t, seq, seq_t, mask, params, **kw)
    out = jax.block_until_ready(out)

    ref = reference_forward(src, seq, params)
    assert attn is None
    assert out.shape == (B, D)
    err = jnp.max(jnp.abs(out - ref))
    assert jnp.allclose(out, ref, atol=1e-4, rtol=1e-4), (
        f"mismatch B={B} N={N}: max err {err}")


if __name__ == "__main__":
    D = 32  # feat_dim
    key = jax.random.PRNGKey(0)
    k_p, k_a, k_b, k_c = jax.random.split(key, 4)
    params = init_params(D, k_p)

    # Whole flattened row (L=256) in a single block: init+finalize in one step.
    _run_case(8, 8, D, k_a, params)
    # Tiny batch (full-dim batch block) + ragged N: remainder-chunk lane mask.
    _run_case(2, 7, D, k_b, params)
    # Ragged batch & sequence, multi-step grid on both axes: exercises the
    # multi-chunk accumulation, the masked tail block and batch-block overhang.
    _run_case(20, 37, D, k_c, params)

    print("KERNEL_OK")
</pallas_src>

<mosaic_0001>
module attributes {stable_mosaic.version = 11 : i64} {
  func.func @meanpool_kernel(%arg0: i32, %arg1: i32, %arg2: memref<8x32xf32, #tpu.memory_space<vmem>>, %arg3: memref<8x256xf32, #tpu.memory_space<vmem>>, %arg4: memref<64x32xf32, #tpu.memory_space<vmem>>, %arg5: memref<1x32xf32, #tpu.memory_space<vmem>>, %arg6: memref<32x32xf32, #tpu.memory_space<vmem>>, %arg7: memref<1x32xf32, #tpu.memory_space<vmem>>, %arg8: memref<8x32xf32, #tpu.memory_space<vmem>>, %arg9: memref<8x128xf32, #tpu.memory_space<vmem>>) attributes {dimension_semantics = [#tpu.dimension_semantics<parallel>, #tpu.dimension_semantics<arbitrary>], iteration_bounds = array<i64: 1, 1>, scalar_prefetch = 0 : i64, scratch_operands = 1 : i64, tpu.core_type = #tpu.core_type<tc>, window_params = [{transform_indices = @transform_0, window_bounds = array<i64: 8, 32>}, {transform_indices = @transform_1, window_bounds = array<i64: 8, 256>}, {pipeline_mode = #tpu.pipeline_mode<synchronous>, transform_indices = @transform_2, window_bounds = array<i64: 64, 32>}, {pipeline_mode = #tpu.pipeline_mode<synchronous>, transform_indices = @transform_3, window_bounds = array<i64: 1, 32>}, {pipeline_mode = #tpu.pipeline_mode<synchronous>, transform_indices = @transform_4, window_bounds = array<i64: 32, 32>}, {pipeline_mode = #tpu.pipeline_mode<synchronous>, transform_indices = @transform_5, window_bounds = array<i64: 1, 32>}, {transform_indices = @transform_6, window_bounds = array<i64: 8, 32>}]} {
    %c0_i32 = arith.constant 0 : i32
    %0 = arith.cmpi eq, %arg1, %c0_i32 : i32
    %1 = arith.extui %0 : i1 to i32
    %c0_i32_0 = arith.constant 0 : i32
    %2 = arith.cmpi ne, %1, %c0_i32_0 : i32
    scf.if %2 {
      %cst = arith.constant 0.000000e+00 : f32
      %12 = vector.broadcast %cst : f32 to vector<8x128xf32>
      %c0_9 = arith.constant 0 : index
      %c0_10 = arith.constant 0 : index
      %13 = vector.load %arg9[%c0_9, %c0_10] : memref<8x128xf32, #tpu.memory_space<vmem>>, vector<8x128xf32>
      tpu.vector_store %arg9[%c0_9, %c0_10], %12 {strides = array<i32>} : memref<8x128xf32, #tpu.memory_space<vmem>>, vector<8x128xf32>,
    } else {
    }
    %c0 = arith.constant 0 : index
    %c0_1 = arith.constant 0 : index
    %3 = vector.load %arg9[%c0, %c0_1] : memref<8x128xf32, #tpu.memory_space<vmem>>, vector<8x128xf32>
    %c0_2 = arith.constant 0 : index
    %c0_3 = arith.constant 0 : index
    %4 = vector.load %arg3[%c0_2, %c0_3] : memref<8x256xf32, #tpu.memory_space<vmem>>, vector<8x128xf32>
    %5 = arith.addf %3, %4 : vector<8x128xf32>
    %c0_4 = arith.constant 0 : index
    %c128 = arith.constant 128 : index
    %6 = vector.load %arg3[%c0_4, %c128] : memref<8x256xf32, #tpu.memory_space<vmem>>, vector<8x128xf32>
    %7 = arith.addf %5, %6 : vector<8x128xf32>
    %c0_5 = arith.constant 0 : index
    %c0_6 = arith.constant 0 : index
    %8 = vector.load %arg9[%c0_5, %c0_6] : memref<8x128xf32, #tpu.memory_space<vmem>>, vector<8x128xf32>
    tpu.vector_store %arg9[%c0_5, %c0_6], %7 {strides = array<i32>} : memref<8x128xf32, #tpu.memory_space<vmem>>, vector<8x128xf32>,
    %c0_i32_7 = arith.constant 0 : i32
    %9 = arith.cmpi eq, %arg1, %c0_i32_7 : i32
    %10 = arith.extui %9 : i1 to i32
    %c0_i32_8 = arith.constant 0 : i32
    %11 = arith.cmpi ne, %10, %c0_i32_8 : i32
    scf.if %11 {
      %c0_9 = arith.constant 0 : index
      %c0_10 = arith.constant 0 : index
      %12 = vector.load %arg9[%c0_9, %c0_10] : memref<8x128xf32, #tpu.memory_space<vmem>>, vector<8x128xf32>
      %13 = vector.extract_strided_slice %12 {offsets = [0, 0], sizes = [8, 32], strides = [1, 1]} : vector<8x128xf32> to vector<8x32xf32>
      %14 = vector.extract_strided_slice %12 {offsets = [0, 32], sizes = [8, 32], strides = [1, 1]} : vector<8x128xf32> to vector<8x32xf32>
      %15 = arith.addf %13, %14 : vector<8x32xf32>
      %16 = vector.extract_strided_slice %12 {offsets = [0, 64], sizes = [8, 32], strides = [1, 1]} : vector<8x128xf32> to vector<8x32xf32>
      %17 = arith.addf %15, %16 : vector<8x32xf32>
      %18 = vector.extract_strided_slice %12 {offsets = [0, 96], sizes = [8, 32], strides = [1, 1]} : vector<8x128xf32> to vector<8x32xf32>
      %19 = arith.addf %17, %18 : vector<8x32xf32>
      %cst = arith.constant 1.250000e-01 : f32
      %20 = vector.broadcast %cst : f32 to vector<8x32xf32>
      %21 = arith.mulf %19, %20 : vector<8x32xf32>
      %c0_11 = arith.constant 0 : index
      %c0_12 = arith.constant 0 : index
      %22 = vector.load %arg2[%c0_11, %c0_12] : memref<8x32xf32, #tpu.memory_space<vmem>>, vector<8x32xf32>
      %c0_13 = arith.constant 0 : index
      %c0_14 = arith.constant 0 : index
      %23 = vector.load %arg4[%c0_13, %c0_14] : memref<64x32xf32, #tpu.memory_space<vmem>>, vector<32x32xf32>
      %cst_15 = arith.constant dense<0.000000e+00> : vector<8x32xf32>
      %24 = tpu.matmul %21, %23, %cst_15 {dimension_numbers = #tpu.dot_dimension_numbers<[1], [0], [0], [1], [0, 0, 1, 1], [], []>} : vector<8x32xf32>, vector<32x32xf32>, vector<8x32xf32> -> vector<8x32xf32>
      %c32 = arith.constant 32 : index
      %c0_16 = arith.constant 0 : index
      %25 = vector.load %arg4[%c32, %c0_16] : memref<64x32xf32, #tpu.memory_space<vmem>>, vector<32x32xf32>
      %cst_17 = arith.constant dense<0.000000e+00> : vector<8x32xf32>
      %26 = tpu.matmul %22, %25, %cst_17 {dimension_numbers = #tpu.dot_dimension_numbers<[1], [0], [0], [1], [0, 0, 1, 1], [], []>} : vector<8x32xf32>, vector<32x32xf32>, vector<8x32xf32> -> vector<8x32xf32>
      %27 = arith.addf %24, %26 : vector<8x32xf32>
      %c0_18 = arith.constant 0 : index
      %c0_19 = arith.constant 0 : index
      %28 = vector.load %arg5[%c0_18, %c0_19] : memref<1x32xf32, #tpu.memory_space<vmem>>, vector<1x32xf32>
      %29 = vector.broadcast %28 : vector<1x32xf32> to vector<8x32xf32>
      %30 = arith.addf %27, %29 : vector<8x32xf32>
      %cst_20 = arith.constant 0.000000e+00 : f32
      %31 = vector.broadcast %cst_20 : f32 to vector<8x32xf32>
      %32 = arith.maximumf %30, %31 : vector<8x32xf32>
      %c0_21 = arith.constant 0 : index
      %c0_22 = arith.constant 0 : index
      %33 = vector.load %arg6[%c0_21, %c0_22] : memref<32x32xf32, #tpu.memory_space<vmem>>, vector<32x32xf32>
      %cst_23 = arith.constant dense<0.000000e+00> : vector<8x32xf32>
      %34 = tpu.matmul %32, %33, %cst_23 {dimension_numbers = #tpu.dot_dimension_numbers<[1], [0], [0], [1], [0, 0, 1, 1], [], []>} : vector<8x32xf32>, vector<32x32xf32>, vector<8x32xf32> -> vector<8x32xf32>
      %c0_24 = arith.constant 0 : index
      %c0_25 = arith.constant 0 : index
      %35 = vector.load %arg7[%c0_24, %c0_25] : memref<1x32xf32, #tpu.memory_space<vmem>>, vector<1x32xf32>
      %36 = vector.broadcast %35 : vector<1x32xf32> to vector<8x32xf32>
      %37 = arith.addf %34, %36 : vector<8x32xf32>
      %c0_26 = arith.constant 0 : index
      %c0_27 = arith.constant 0 : index
      %38 = vector.load %arg8[%c0_26, %c0_27] : memref<8x32xf32, #tpu.memory_space<vmem>>, vector<8x32xf32>
      tpu.vector_store %arg8[%c0_26, %c0_27], %37 {strides = array<i32>} : memref<8x32xf32, #tpu.memory_space<vmem>>, vector<8x32xf32>,
    } else {
    }
    return
  }
  func.func @transform_0(%arg0: i32, %arg1: i32) -> (i32, i32) {
    %c0_i32 = arith.constant 0 : i32
    %c0_i32_0 = arith.constant 0 : i32
    return %arg0, %c0_i32 : i32, i32
  }
  func.func @transform_1(%arg0: i32, %arg1: i32) -> (i32, i32) {
    %c0_i32 = arith.constant 0 : i32
    return %arg0, %arg1 : i32, i32
  }
  func.func @transform_2(%arg0: i32, %arg1: i32) -> (i32, i32) {
    %c0_i32 = arith.constant 0 : i32
    %c0_i32_0 = arith.constant 0 : i32
    %c0_i32_1 = arith.constant 0 : i32
    return %c0_i32, %c0_i32_0 : i32, i32
  }
  func.func @transform_3(%arg0: i32, %arg1: i32) -> (i32, i32) {
    %c0_i32 = arith.constant 0 : i32
    %c0_i32_0 = arith.constant 0 : i32
    %c0_i32_1 = arith.constant 0 : i32
    return %c0_i32, %c0_i32_0 : i32, i32
  }
  func.func @transform_4(%arg0: i32, %arg1: i32) -> (i32, i32) {
    %c0_i32 = arith.constant 0 : i32
    %c0_i32_0 = arith.constant 0 : i32
    %c0_i32_1 = arith.constant 0 : i32
    return %c0_i32, %c0_i32_0 : i32, i32
  }
  func.func @transform_5(%arg0: i32, %arg1: i32) -> (i32, i32) {
    %c0_i32 = arith.constant 0 : i32
    %c0_i32_0 = arith.constant 0 : i32
    %c0_i32_1 = arith.constant 0 : i32
    return %c0_i32, %c0_i32_0 : i32, i32
  }
  func.func @transform_6(%arg0: i32, %arg1: i32) -> (i32, i32) {
    %c0_i32 = arith.constant 0 : i32
    %c0_i32_0 = arith.constant 0 : i32
    return %arg0, %c0_i32 : i32, i32
  }
}

</mosaic_0001>

<llo_original>
// kernel: tpu_custom_call.1
$region0: #{tpu_custom_call.1}
  #allocation0 [shape = 'u32[]', space=smem, size = 0x4, offset = 0x4, fixed_abs, tag = 'smem constant byte address 0x4 - core index']
  #allocation1 [shape = 'u32[144,128]{1,0:T(1,128)}', space=vmem, size = 0x12000, scoped, tag = 'internal scratch']
  #allocation2 [shape = 'f32[8,128]{1,0:T(8,128)}', space=vmem, size = 0x1000, scoped, tag = 'scratch operand']
  %s0 = inlined_call_operand.vmem [shape: f32[8,32], index: 0, kind: input, shape index: {}]
  %s1 = inlined_call_operand.vmem [shape: f32[8,256], index: 1, kind: input, shape index: {}]
  %s2 = inlined_call_operand.vmem [shape: f32[64,32], index: 2, kind: input, shape index: {}]
  %s3 = inlined_call_operand.vmem [shape: f32[1,32], index: 3, kind: input, shape index: {}]
  %s4 = inlined_call_operand.vmem [shape: f32[32,32], index: 4, kind: input, shape index: {}]
  %s5 = inlined_call_operand.vmem [shape: f32[1,32], index: 5, kind: input, shape index: {}]
  %s6 = inlined_call_operand.hbm [shape: f32[8,32], index: 6, kind: output, shape index: {}]
  %s7 = sld [smem:[#allocation0]]
  $region42: #{tpu_custom_call.1} parent=0
    _
  %s9 = ssub.s32 1, %s7
  %s10 = scalar_select 0, %s9, %s7
  $region1: #{tpu_custom_call.1} parent=0
    #allocation3 [shape = 'u8[4096]{0}', space=vmem, size = 0x1000, scoped, tag = 'output window, operand 0, single buffered']
    #allocation4 [shape = 's32[1]{0}', space=sflag, size = 0x4, scoped, tag = 'scoped memory for tpu_custom_call.1']
    %11 = vsyncpa [#allocation4], 0
    // Predicated region
    $region2: #{tpu_custom_call.1} parent=1 // pred_check
      _
    $region3: #{tpu_custom_call.1} parent=1 // pred_check_branch
      %13 = sbr.rel (0) target = $region5
    $region4: #{tpu_custom_call.1} parent=1 // pred_region
      _
    $region5: #{tpu_custom_call.1} parent=1 // pred_fallthru
      _
    // Predicated region
    $region6: #{tpu_custom_call.1} parent=1 // pred_check
      _
    $region7: #{tpu_custom_call.1} parent=1 // pred_check_branch
      %15 = sbr.rel (0) target = $region9
    $region8: #{tpu_custom_call.1} parent=1 // pred_region
      _
    $region9: #{tpu_custom_call.1} parent=1 // pred_fallthru
      _
    // Predicated region
    $region10: #{tpu_custom_call.1} parent=1 // pred_check
      _
    $region11: #{tpu_custom_call.1} parent=1 // pred_check_branch
      %17 = sbr.rel (0) target = $region13
    $region12: #{tpu_custom_call.1} parent=1 // pred_region
      _
    $region13: #{tpu_custom_call.1} parent=1 // pred_fallthru
      _
    // Predicated region
    $region14: #{tpu_custom_call.1} parent=1 // pred_check
      _
    $region15: #{tpu_custom_call.1} parent=1 // pred_check_branch
      %19 = sbr.rel (0) target = $region17
    $region16: #{tpu_custom_call.1} parent=1 // pred_region
      _
    $region17: #{tpu_custom_call.1} parent=1 // pred_fallthru
      _
    // Predicated region
    $region18: #{tpu_custom_call.1} parent=1 // pred_check
      _
    $region19: #{tpu_custom_call.1} parent=1 // pred_check_branch
      %21 = sbr.rel (0) target = $region21
    $region20: #{tpu_custom_call.1} parent=1 // pred_region
      _
    $region21: #{tpu_custom_call.1} parent=1 // pred_fallthru
      _
    // Predicated region
    $region22: #{tpu_custom_call.1} parent=1 // pred_check
      _
    $region23: #{tpu_custom_call.1} parent=1 // pred_check_branch
      %23 = sbr.rel (0) target = $region25
    $region24: #{tpu_custom_call.1} parent=1 // pred_region
      _
    $region25: #{tpu_custom_call.1} parent=1 // pred_fallthru
      _
    %p24 = scmp.eq.s32.totalorder 0, 0
    // Predicated region
    $region26: #{tpu_custom_call.1} parent=1 // pred_check
      %p25 = pneg %p24
    $region27: #{tpu_custom_call.1} parent=1 // pred_check_branch
      %27 = sbr.rel (%p25) target = $region29
    $region28: #{tpu_custom_call.1} parent=1 // pred_region
      %28 = vst [vmem:[#allocation2] sm:$0xff] 0.0
    $region29: #{tpu_custom_call.1} parent=1 // pred_fallthru
      _
    %v29 = vld [vmem:[#allocation2] sm:$0xff]
    %v30 = vld [vmem:[%s1] sm:$0xff]
    %v31 = vadd.f32 %v29, %v30
    %v32 = vld [vmem:[%s1 + $0x8] sm:$0xff]
    %v33 = vadd.f32 %v31, %v32
    %34 = vst [vmem:[#allocation2] sm:$0xff] %v33
    // Predicated region
    $region30: #{tpu_custom_call.1} parent=1 // pred_check
      %p35 = pneg %p24
    $region31: #{tpu_custom_call.1} parent=1 // pred_check_branch
      %37 = sbr.rel (%p35) target = $region33
    $region32: #{tpu_custom_call.1} parent=1 // pred_region
      %v38 = vld [vmem:[#allocation2] sm:$0xff]
      %40 = vrot.lane.b32.xlu0 %v38, 96
      %v41 = vpop.permute.xlu0 %40
      %v43 = vadd.f32 %v38, %v41
      %44 = vrot.lane.b32.xlu0 %v38, 64
      %v45 = vpop.permute.xlu0 %44
      %v47 = vadd.f32 %v43, %v45
      %48 = vrot.lane.b32.xlu0 %v38, 32
      %v49 = vpop.permute.xlu0 %48
      %v51 = vadd.f32 %v47, %v49
      %v52 = vmul.f32 %v51, 0.125
      %v53 = vld [vmem:[%s0] sm:$0xff]
      %v54 = vld [vmem:[%s2] sm:$0xff]
      %v55 = vld [vmem:[%s2 + $0x8] sm:$0xff]
      %v56 = vld [vmem:[%s2 + $0x10] sm:$0xff]
      %v57 = vld [vmem:[%s2 + $0x18] sm:$0xff]
      %v58 = vld [vmem:[%s2 + $0x20] sm:$0xff]
      %v59 = vld [vmem:[%s2 + $0x28] sm:$0xff]
      %v60 = vld [vmem:[%s2 + $0x30] sm:$0xff]
      %v61 = vld [vmem:[%s2 + $0x38] sm:$0xff]
      %vm62 = vcmask 261120
      %v64 = vsel %vm62, %v53, 0
      %66 = vmatprep.subr.mxu0 0.0
      %67 = vmatpush1.msra.mxu0 %v58
      %68 = vmatprep.subr.mxu0 0.0
      %69 = vmatpush1.msra.mxu0 %v59
      %70 = vmatprep.subr.mxu0 0.0
      %71 = vmatpush1.msra.mxu0 %v60
      %72 = vmatprep.subr.mxu0 0.0
      %73 = vmatpush1.msra.mxu0 %v61
      %74 = vmatprep.subr.mxu0 0.0
      %75 = vmatpush1.msra.mxu0 0.0
      %76 = vmatprep.subr.mxu0 0.0
      %77 = vmatpush1.msra.mxu0 0.0
      %78 = vmatprep.subr.mxu0 0.0
      %79 = vmatpush1.msra.mxu0 0.0
      %80 = vmatprep.subr.mxu0 0.0
      %81 = vmatpush1.msra.mxu0 0.0
      %82 = vmatprep.subr.mxu0 0.0
      %83 = vmatpush1.msra.mxu0 0.0
      %84 = vmatprep.subr.mxu0 0.0
      %85 = vmatpush1.msra.mxu0 0.0
      %86 = vmatprep.subr.mxu0 0.0
      %87 = vmatpush1.msra.mxu0 0.0
      %88 = vmatprep.subr.mxu0 0.0
      %89 = vmatpush1.msra.mxu0 0.0
      %90 = vmatprep.subr.mxu0 0.0
      %91 = vmatpush1.msra.mxu0 0.0
      %92 = vmatprep.subr.mxu0 0.0
      %93 = vmatpush1.msra.mxu0 0.0
      %94 = vmatprep.subr.mxu0 0.0
      %95 = vmatpush1.msra.mxu0 0.0
      %96 = vmatprep.subr.mxu0 0.0
      %97 = vmatpush1.msra.mxu0 0.0
      %98 = vmatprep.subr.mxu0 0.0
      %99 = vmatpush1.msra.mxu0 0.0
      %100 = vmatprep.subr.mxu0 0.0
      %101 = vmatpush1.msra.mxu0 0.0
      %102 = vmatprep.subr.mxu0 0.0
      %103 = vmatpush1.msra.mxu0 0.0
      %104 = vmatprep.subr.mxu0 0.0
      %105 = vmatpush1.msra.mxu0 0.0
      %106 = vmatprep.subr.mxu0 0.0
      %107 = vmatpush1.msra.mxu0 0.0
      %108 = vmatprep.subr.mxu0 0.0
      %109 = vmatpush1.msra.mxu0 0.0
      %110 = vmatprep.subr.mxu0 0.0
      %111 = vmatpush1.msra.mxu0 0.0
      %112 = vmatprep.subr.mxu0 0.0
      %113 = vmatpush1.msra.mxu0 0.0
      %114 = vmatprep.subr.mxu0 0.0
      %115 = vmatpush1.msra.mxu0 0.0
      %116 = vmatprep.subr.mxu0 0.0
      %117 = vmatpush1.msra.mxu0 0.0
      %118 = vmatprep.subr.mxu0 0.0
      %119 = vmatpush1.msra.mxu0 0.0
      %120 = vmatprep.subr.mxu0 0.0
      %121 = vmatpush1.msra.mxu0 0.0
      %122 = vmatprep.subr.mxu0 0.0
      %123 = vmatpush1.msra.mxu0 0.0
      %124 = vmatprep.subr.mxu0 0.0
      %125 = vmatpush1.msra.mxu0 0.0
      %126 = vmatprep.subr.mxu0 0.0
      %127 = vmatpush1.msra.mxu0 0.0
      %128 = vmatprep.subr.mxu0 0.0
      %129 = vmatpush1.msra.mxu0 0.0
      %130 = vmatprep.mubr.f32.mxu0 0.0
      %131 = vmatmul.mubr.f32.gmra.mrb[0].mxu0 %v64
      %v132 = vpop.f32.mrb[0].mxu0
      %v133 = vadd.f32 0.0, %v132
      %v134 = vpop.f32.mrb[0].mxu0
      %135 = vdwg.mxu0
      %v137 = vsel %vm62, %v52, 0
      %139 = vmatprep.subr.mxu0 0.0
      %140 = vmatpush1.msra.mxu0 %v54
      %141 = vmatprep.subr.mxu0 0.0
      %142 = vmatpush1.msra.mxu0 %v55
      %143 = vmatprep.subr.mxu0 0.0
      %144 = vmatpush1.msra.mxu0 %v56
      %145 = vmatprep.subr.mxu0 0.0
      %146 = vmatpush1.msra.mxu0 %v57
      %147 = vmatprep.subr.mxu0 0.0
      %148 = vmatpush1.msra.mxu0 0.0
      %149 = vmatprep.subr.mxu0 0.0
      %150 = vmatpush1.msra.mxu0 0.0
      %151 = vmatprep.subr.mxu0 0.0
      %152 = vmatpush1.msra.mxu0 0.0
      %153 = vmatprep.subr.mxu0 0.0
      %154 = vmatpush1.msra.mxu0 0.0
      %155 = vmatprep.subr.mxu0 0.0
      %156 = vmatpush1.msra.mxu0 0.0
      %157 = vmatprep.subr.mxu0 0.0
      %158 = vmatpush1.msra.mxu0 0.0
      %159 = vmatprep.subr.mxu0 0.0
      %160 = vmatpush1.msra.mxu0 0.0
      %161 = vmatprep.subr.mxu0 0.0
      %162 = vmatpush1.msra.mxu0 0.0
      %163 = vmatprep.subr.mxu0 0.0
      %164 = vmatpush1.msra.mxu0 0.0
      %165 = vmatprep.subr.mxu0 0.0
      %166 = vmatpush1.msra.mxu0 0.0
      %167 = vmatprep.subr.mxu0 0.0
      %168 = vmatpush1.msra.mxu0 0.0
      %169 = vmatprep.subr.mxu0 0.0
      %170 = vmatpush1.msra.mxu0 0.0
      %171 = vmatprep.subr.mxu0 0.0
      %172 = vmatpush1.msra.mxu0 0.0
      %173 = vmatprep.subr.mxu0 0.0
      %174 = vmatpush1.msra.mxu0 0.0
      %175 = vmatprep.subr.mxu0 0.0
      %176 = vmatpush1.msra.mxu0 0.0
      %177 = vmatprep.subr.mxu0 0.0
      %178 = vmatpush1.msra.mxu0 0.0
      %179 = vmatprep.subr.mxu0 0.0
      %180 = vmatpush1.msra.mxu0 0.0
      %181 = vmatprep.subr.mxu0 0.0
      %182 = vmatpush1.msra.mxu0 0.0
      %183 = vmatprep.subr.mxu0 0.0
      %184 = vmatpush1.msra.mxu0 0.0
      %185 = vmatprep.subr.mxu0 0.0
      %186 = vmatpush1.msra.mxu0 0.0
      %187 = vmatprep.subr.mxu0 0.0
      %188 = vmatpush1.msra.mxu0 0.0
      %189 = vmatprep.subr.mxu0 0.0
      %190 = vmatpush1.msra.mxu0 0.0
      %191 = vmatprep.subr.mxu0 0.0
      %192 = vmatpush1.msra.mxu0 0.0
      %193 = vmatprep.subr.mxu0 0.0
      %194 = vmatpush1.msra.mxu0 0.0
      %195 = vmatprep.subr.mxu0 0.0
      %196 = vmatpush1.msra.mxu0 0.0
      %197 = vmatprep.subr.mxu0 0.0
      %198 = vmatpush1.msra.mxu0 0.0
      %199 = vmatprep.subr.mxu0 0.0
      %200 = vmatpush1.msra.mxu0 0.0
      %201 = vmatprep.subr.mxu0 0.0
      %202 = vmatpush1.msra.mxu0 0.0
      %203 = vmatprep.mubr.f32.mxu0 0.0
      %204 = vmatmul.mubr.f32.gmra.mrb[0].mxu0 %v137
      %v205 = vpop.f32.mrb[0].mxu0
      %v206 = vadd.f32 %v133, %v205
      %v207 = vpop.f32.mrb[0].mxu0
      %208 = vdwg.mxu0
      %v209 = vld [vmem:[%s3] sm:$0x1]
      %v211 = vlaneseq
      %v212 = vshrl.u32 %v211, 7
      %v213 = vsub.s32 0, %v212
      %v214 = vrot.slane %v209, %v213
      %v216 = vadd.f32 %v206, %v214
      %v217 = vmax.f32 %v216, 0.0
      %v218 = vld [vmem:[%s4] sm:$0xff]
      %v219 = vld [vmem:[%s4 + $0x8] sm:$0xff]
      %v220 = vld [vmem:[%s4 + $0x10] sm:$0xff]
      %v221 = vld [vmem:[%s4 + $0x18] sm:$0xff]
      %v222 = vld [vmem:[%s5] sm:$0x1]
      %v224 = vlaneseq
      %v225 = vshrl.u32 %v224, 7
      %v226 = vsub.s32 0, %v225
      %v227 = vrot.slane %v222, %v226
      %v230 = vsel %vm62, %v217, 0
      %232 = vmatprep.subr.mxu0 0.0
      %233 = vmatpush1.msra.mxu0 %v218
      %234 = vmatprep.subr.mxu0 0.0
      %235 = vmatpush1.msra.mxu0 %v219
      %236 = vmatprep.subr.mxu0 0.0
      %237 = vmatpush1.msra.mxu0 %v220
      %238 = vmatprep.subr.mxu0 0.0
      %239 = vmatpush1.msra.mxu0 %v221
      %240 = vmatprep.subr.mxu0 0.0
      %241 = vmatpush1.msra.mxu0 0.0
      %242 = vmatprep.subr.mxu0 0.0
      %243 = vmatpush1.msra.mxu0 0.0
      %244 = vmatprep.subr.mxu0 0.0
      %245 = vmatpush1.msra.mxu0 0.0
      %246 = vmatprep.subr.mxu0 0.0
      %247 = vmatpush1.msra.mxu0 0.0
      %248 = vmatprep.subr.mxu0 0.0
      %249 = vmatpush1.msra.mxu0 0.0
      %250 = vmatprep.subr.mxu0 0.0
      %251 = vmatpush1.msra.mxu0 0.0
      %252 = vmatprep.subr.mxu0 0.0
      %253 = vmatpush1.msra.mxu0 0.0
      %254 = vmatprep.subr.mxu0 0.0
      %255 = vmatpush1.msra.mxu0 0.0
      %256 = vmatprep.subr.mxu0 0.0
      %257 = vmatpush1.msra.mxu0 0.0
      %258 = vmatprep.subr.mxu0 0.0
      %259 = vmatpush1.msra.mxu0 0.0
      %260 = vmatprep.subr.mxu0 0.0
      %261 = vmatpush1.msra.mxu0 0.0
      %262 = vmatprep.subr.mxu0 0.0
      %263 = vmatpush1.msra.mxu0 0.0
      %264 = vmatprep.subr.mxu0 0.0
      %265 = vmatpush1.msra.mxu0 0.0
      %266 = vmatprep.subr.mxu0 0.0
      %267 = vmatpush1.msra.mxu0 0.0
      %268 = vmatprep.subr.mxu0 0.0
      %269 = vmatpush1.msra.mxu0 0.0
      %270 = vmatprep.subr.mxu0 0.0
      %271 = vmatpush1.msra.mxu0 0.0
      %272 = vmatprep.subr.mxu0 0.0
      %273 = vmatpush1.msra.mxu0 0.0
      %274 = vmatprep.subr.mxu0 0.0
      %275 = vmatpush1.msra.mxu0 0.0
      %276 = vmatprep.subr.mxu0 0.0
      %277 = vmatpush1.msra.mxu0 0.0
      %278 = vmatprep.subr.mxu0 0.0
      %279 = vmatpush1.msra.mxu0 0.0
      %280 = vmatprep.subr.mxu0 0.0
      %281 = vmatpush1.msra.mxu0 0.0
      %282 = vmatprep.subr.mxu0 0.0
      %283 = vmatpush1.msra.mxu0 0.0
      %284 = vmatprep.subr.mxu0 0.0
      %285 = vmatpush1.msra.mxu0 0.0
      %286 = vmatprep.subr.mxu0 0.0
      %287 = vmatpush1.msra.mxu0 0.0
      %288 = vmatprep.subr.mxu0 0.0
      %289 = vmatpush1.msra.mxu0 0.0
      %290 = vmatprep.subr.mxu0 0.0
      %291 = vmatpush1.msra.mxu0 0.0
      %292 = vmatprep.subr.mxu0 0.0
      %293 = vmatpush1.msra.mxu0 0.0
      %294 = vmatprep.subr.mxu0 0.0
      %295 = vmatpush1.msra.mxu0 0.0
      %296 = vmatprep.mubr.f32.mxu0 0.0
      %297 = vmatmul.mubr.f32.gmra.mrb[0].mxu0 %v230
      %v298 = vpop.f32.mrb[0].mxu0
      %v299 = vadd.f32 %v227, %v298
      %v300 = vpop.f32.mrb[0].mxu0
      %301 = vdwg.mxu0
      %302 = vst.msk [vmem:[#allocation3] sm:$0xff] %vm62, %v299
    $region33: #{tpu_custom_call.1} parent=1 // pred_fallthru
      _
    // Predicated region
    $region34: #{tpu_custom_call.1} parent=1 // pred_check
      _
    $region35: #{tpu_custom_call.1} parent=1 // pred_check_branch
      %304 = sbr.rel (0) target = $region37
    $region36: #{tpu_custom_call.1} parent=1 // pred_region
      %s306 = ssub.s32 128, 128
      %307 = vsyncadd [#allocation4], %s306
      %s309 = sshll.u32 [#allocation3], 4
      %s310 = int_to_ptr.vmem [resolvable:$true] %s309
      %312 = dma.vmem_to_hbm [thread:$0]  %s310, 128, %s6, [#allocation4]
    $region37: #{tpu_custom_call.1} parent=1 // pred_fallthru
      _
    // Predicated region
    $region38: #{tpu_custom_call.1} parent=1 // pred_check
      _
    $region39: #{tpu_custom_call.1} parent=1 // pred_check_branch
      %314 = sbr.rel (0) target = $region41
    $region40: #{tpu_custom_call.1} parent=1 // pred_region
      %315 = dma.done [#allocation4], 128
    $region41: #{tpu_custom_call.1} parent=1 // pred_fallthru
      _
    %316 = vsyncpa [#allocation4], 1

</llo_original>
